<compile_context>
chip_gen: v7x
topology: tpu7x:2x2x1
jax: 0.10.0
libtpu: 0.0.40
codegen_flags: <defaults>
</compile_context>

<pallas_src>
import jax
import jax.numpy as jnp
from jax.experimental import pallas as pl
from jax.experimental.pallas import tpu as pltpu

HIDDEN = 128
NOBS_PAD = 8       # n_observations (4) padded to a sublane multiple; one spare
                   # column carries the constant 1.0 that folds in layer-1 bias
NACT_PAD = 128     # n_actions (2) padded to a full lane width (lane-dense out)

MAX_TILE_M = 4096  # per-tile VMEM (x 64 KiB bf16 + out 1 MiB bf16, x2 buffers)
MIN_TILE_M = 16    # native bf16 sublane tile is (16, 128)


def _cdiv(a, b):
    return (a + b - 1) // b


def _round_up(x, m):
    return _cdiv(x, m) * m


def _choose_tiling(B):
    """Pick (tile_m, padded_batch, n_tiles): few fat tiles, even grid for v7x."""
    n_tiles = max(1, _cdiv(B, MAX_TILE_M))
    # v7x has 2 TensorCores; with dimension_semantics=("parallel",) an even
    # grid length lets both cores get work. Only worth it for biggish batches.
    if B >= 1024 and n_tiles % 2 == 1:
        n_tiles += 1
    tile_m = _round_up(_cdiv(B, n_tiles), MIN_TILE_M)
    return tile_m, n_tiles * tile_m, n_tiles


def dqn_kernel(x_ref, w1_ref, wh_ref, bh_ref, out_ref):
    """Fused 4-layer MLP on one batch tile.

    x_ref:   [tile_m, NOBS_PAD] bf16 (column n_obs holds 1.0 -> layer-1 bias)
    w1_ref:  [NOBS_PAD, HIDDEN] bf16 (row n_obs holds b1)
    wh_ref:  [3, HIDDEN, HIDDEN] bf16 (stacked W2^T, W3^T, W4^T-padded)
    bh_ref:  [3, 1, HIDDEN] f32     (stacked b2, b3, b4-padded)
    out_ref: [tile_m, NACT_PAD] bf16 (lane-dense, unmasked stores)
    """
    # Layer 1 (bias folded into w1 via the constant-1.0 input column).
    h = jnp.dot(x_ref[...], w1_ref[...], preferred_element_type=jnp.float32)
    h = jnp.maximum(h, 0.0).astype(jnp.bfloat16)

    # Layer 2
    h = jnp.dot(h, wh_ref[0], preferred_element_type=jnp.float32) + bh_ref[0]
    h = jnp.maximum(h, 0.0).astype(jnp.bfloat16)

    # Layer 3
    h = jnp.dot(h, wh_ref[1], preferred_element_type=jnp.float32) + bh_ref[1]
    h = jnp.maximum(h, 0.0).astype(jnp.bfloat16)

    # Layer 4 (no activation)
    out = jnp.dot(h, wh_ref[2], preferred_element_type=jnp.float32) + bh_ref[2]
    out_ref[...] = out.astype(out_ref.dtype)


def dqn_forward(x, params, n_actions):
    """x: [B, n_obs] float32. Returns [B, n_actions] float32 Q-values."""
    B, n_obs = x.shape
    assert n_obs < NOBS_PAD, "need one spare padding column for the bias fold"

    tile_m, Bp, n_tiles = _choose_tiling(B)

    # Zero-pad batch/features, cast to bf16, and set the constant-1.0 column
    # that multiplies the folded layer-1 bias row of w1.
    xp = jnp.zeros((Bp, NOBS_PAD), jnp.bfloat16)
    xp = xp.at[:B, :n_obs].set(x.astype(jnp.bfloat16))
    xp = xp.at[:B, n_obs].set(jnp.bfloat16(1.0))

    w1, w_h, b_h = params["w1"], params["w_h"], params["b_h"]

    grid = (n_tiles,)

    x_spec = pl.BlockSpec((tile_m, NOBS_PAD), lambda i: (i, 0))
    out_spec = pl.BlockSpec((tile_m, NACT_PAD), lambda i: (i, 0))
    # Constant block indices -> weights/biases DMA'd once and VMEM-resident.
    w1_spec = pl.BlockSpec(w1.shape, lambda i: (0, 0))
    wh_spec = pl.BlockSpec(w_h.shape, lambda i: (0, 0, 0))
    bh_spec = pl.BlockSpec(b_h.shape, lambda i: (0, 0, 0))

    flops = 2 * Bp * (NOBS_PAD * HIDDEN + 2 * HIDDEN * HIDDEN
                      + HIDDEN * NACT_PAD)
    bytes_accessed = (xp.size * xp.dtype.itemsize
                      + w1.size * w1.dtype.itemsize
                      + w_h.size * w_h.dtype.itemsize
                      + b_h.size * b_h.dtype.itemsize
                      + Bp * NACT_PAD * 2)

    out_padded = pl.pallas_call(
        dqn_kernel,
        out_shape=jax.ShapeDtypeStruct((Bp, NACT_PAD), jnp.bfloat16),
        grid=grid,
        in_specs=[x_spec, w1_spec, wh_spec, bh_spec],
        out_specs=out_spec,
        compiler_params=pltpu.CompilerParams(
            dimension_semantics=("parallel",),
            vmem_limit_bytes=32 * 1024 * 1024),
        cost_estimate=pl.CostEstimate(
            flops=flops, transcendentals=0, bytes_accessed=bytes_accessed),
    )(xp, w1, w_h, b_h)

    # Match the PyTorch forward's return type (f32 Q-values).
    return out_padded[:B, :n_actions].astype(jnp.float32)


def init_params(key, n_observations, n_actions, hidden=HIDDEN):
    """PyTorch-style default Linear init (uniform +/- 1/sqrt(fan_in)).

    Weights stored pre-transposed as [in, out] bf16, padded to lane/sublane
    friendly shapes; layer-1 bias folded into w1; layers 2-4 weights/biases
    stacked into single operands.
    """
    def uniform_linear(key, fan_in, fan_out):
        kw, kb = jax.random.split(key)
        bound = 1.0 / jnp.sqrt(jnp.float32(fan_in))
        w = jax.random.uniform(kw, (fan_in, fan_out), jnp.float32, -bound, bound)
        b = jax.random.uniform(kb, (fan_out,), jnp.float32, -bound, bound)
        return w, b

    k1, k2, k3, k4 = jax.random.split(key, 4)
    w1, b1 = uniform_linear(k1, n_observations, hidden)
    w2, b2 = uniform_linear(k2, hidden, hidden)
    w3, b3 = uniform_linear(k3, hidden, hidden)
    w4, b4 = uniform_linear(k4, hidden, n_actions)

    # Layer 1: bias folded in as the row addressed by x's constant-1.0 column.
    w1_aug = jnp.zeros((NOBS_PAD, hidden), jnp.bfloat16)
    w1_aug = w1_aug.at[:n_observations, :].set(w1.astype(jnp.bfloat16))
    w1_aug = w1_aug.at[n_observations, :].set(b1.astype(jnp.bfloat16))

    # Layers 2-4 weights stacked (w4 zero-padded to NACT_PAD columns).
    w4_pad = jnp.zeros((hidden, NACT_PAD), jnp.float32).at[:, :n_actions].set(w4)
    w_h = jnp.stack([w2, w3, w4_pad]).astype(jnp.bfloat16)

    # Layers 2-4 biases stacked (b4 zero-padded), kept f32.
    b4_pad = jnp.zeros((NACT_PAD,), jnp.float32).at[:n_actions].set(b4)
    b_h = jnp.stack([b2, b3, b4_pad])[:, None, :]

    return dict(w1=w1_aug, w_h=w_h, b_h=b_h)


def dqn_reference(x, params, n_obs, n_actions):
    """Plain-JAX reference emulating the kernel's numerics
    (bf16 weights/activations, f32 accumulation, bf16 output round-trip)."""
    B = x.shape[0]
    xa = jnp.zeros((B, NOBS_PAD), jnp.bfloat16)
    xa = xa.at[:, :n_obs].set(x.astype(jnp.bfloat16))
    xa = xa.at[:, n_obs].set(jnp.bfloat16(1.0))

    h = jnp.dot(xa, params["w1"], preferred_element_type=jnp.float32)
    h = jnp.maximum(h, 0.0).astype(jnp.bfloat16)
    for l in range(2):
        h = jnp.dot(h, params["w_h"][l],
                    preferred_element_type=jnp.float32) + params["b_h"][l]
        h = jnp.maximum(h, 0.0).astype(jnp.bfloat16)
    out = jnp.dot(h, params["w_h"][2],
                  preferred_element_type=jnp.float32) + params["b_h"][2]
    out = out.astype(jnp.bfloat16).astype(jnp.float32)
    return out[:, :n_actions]


if __name__ == "__main__":
    key = jax.random.PRNGKey(0)
    k_param, k_small, k_train, k_big = jax.random.split(key, 4)

    # CartPole: n_observations = 4, n_actions = 2.
    n_observations, n_actions = 4, 2
    params = init_params(k_param, n_observations, n_actions)

    # Small batch (action-selection-sized): single 16-row tile.
    x_small = jax.random.normal(k_small, (8, n_observations), jnp.float32)
    out_small = jax.block_until_ready(dqn_forward(x_small, params, n_actions))
    ref_small = dqn_reference(x_small, params, n_observations, n_actions)
    assert out_small.shape == (8, n_actions)
    assert jnp.allclose(out_small, ref_small, atol=1e-2, rtol=1e-2), \
        "small-batch mismatch vs reference"

    # Training batch from the spec (BATCH_SIZE = 128): one fat tile.
    x_train = jax.random.normal(k_train, (128, n_observations), jnp.float32)
    out_train = jax.block_until_ready(dqn_forward(x_train, params, n_actions))
    ref_train = dqn_reference(x_train, params, n_observations, n_actions)
    assert out_train.shape == (128, n_actions)
    assert jnp.allclose(out_train, ref_train, atol=1e-2, rtol=1e-2), \
        "train-batch mismatch vs reference"

    # Large batch: exercises the even, multi-tile grid path (v7x megacore).
    x_big = jax.random.normal(k_big, (1024, n_observations), jnp.float32)
    out_big = jax.block_until_ready(dqn_forward(x_big, params, n_actions))
    ref_big = dqn_reference(x_big, params, n_observations, n_actions)
    assert out_big.shape == (1024, n_actions)
    assert jnp.allclose(out_big, ref_big, atol=1e-2, rtol=1e-2), \
        "large-batch mismatch vs reference"

    print("KERNEL_OK")
</pallas_src>

<mosaic_0001>
module attributes {stable_mosaic.version = 11 : i64} {
  func.func @dqn_kernel(%arg0: i32, %arg1: memref<16x8xbf16, #tpu.memory_space<vmem>>, %arg2: memref<8x128xbf16, #tpu.memory_space<vmem>>, %arg3: memref<3x128x128xbf16, #tpu.memory_space<vmem>>, %arg4: memref<3x1x128xf32, #tpu.memory_space<vmem>>, %arg5: memref<16x128xbf16, #tpu.memory_space<vmem>>) attributes {dimension_semantics = [#tpu.dimension_semantics<parallel>], iteration_bounds = array<i64: 1>, scalar_prefetch = 0 : i64, scratch_operands = 0 : i64, tpu.core_type = #tpu.core_type<tc>, window_params = [{transform_indices = @transform_0, window_bounds = array<i64: 16, 8>}, {pipeline_mode = #tpu.pipeline_mode<synchronous>, transform_indices = @transform_1, window_bounds = array<i64: 8, 128>}, {pipeline_mode = #tpu.pipeline_mode<synchronous>, transform_indices = @transform_2, window_bounds = array<i64: 3, 128, 128>}, {pipeline_mode = #tpu.pipeline_mode<synchronous>, transform_indices = @transform_3, window_bounds = array<i64: 3, 1, 128>}, {transform_indices = @transform_4, window_bounds = array<i64: 16, 128>}]} {
    %c0 = arith.constant 0 : index
    %c0_0 = arith.constant 0 : index
    %0 = vector.load %arg1[%c0, %c0_0] : memref<16x8xbf16, #tpu.memory_space<vmem>>, vector<16x8xbf16>
    %c0_1 = arith.constant 0 : index
    %c0_2 = arith.constant 0 : index
    %1 = vector.load %arg2[%c0_1, %c0_2] : memref<8x128xbf16, #tpu.memory_space<vmem>>, vector<8x128xbf16>
    %cst = arith.constant dense<0.000000e+00> : vector<16x128xf32>
    %2 = tpu.matmul %0, %1, %cst {dimension_numbers = #tpu.dot_dimension_numbers<[1], [0], [0], [1], [0, 0, 1, 1], [], []>} : vector<16x8xbf16>, vector<8x128xbf16>, vector<16x128xf32> -> vector<16x128xf32>
    %cst_3 = arith.constant 0.000000e+00 : f32
    %3 = vector.broadcast %cst_3 : f32 to vector<16x128xf32>
    %4 = arith.maximumf %2, %3 : vector<16x128xf32>
    %5 = arith.truncf %4 : vector<16x128xf32> to vector<16x128xbf16>
    %c0_4 = arith.constant 0 : index
    %c0_5 = arith.constant 0 : index
    %c0_6 = arith.constant 0 : index
    %6 = vector.load %arg3[%c0_4, %c0_5, %c0_6] : memref<3x128x128xbf16, #tpu.memory_space<vmem>>, vector<1x128x128xbf16>
    %7 = vector.shape_cast %6 : vector<1x128x128xbf16> to vector<128x128xbf16>
    %cst_7 = arith.constant dense<0.000000e+00> : vector<16x128xf32>
    %8 = tpu.matmul %5, %7, %cst_7 {dimension_numbers = #tpu.dot_dimension_numbers<[1], [0], [0], [1], [0, 0, 1, 1], [], []>} : vector<16x128xbf16>, vector<128x128xbf16>, vector<16x128xf32> -> vector<16x128xf32>
    %c0_8 = arith.constant 0 : index
    %c0_9 = arith.constant 0 : index
    %c0_10 = arith.constant 0 : index
    %9 = vector.load %arg4[%c0_8, %c0_9, %c0_10] : memref<3x1x128xf32, #tpu.memory_space<vmem>>, vector<1x1x128xf32>
    %10 = vector.shape_cast %9 : vector<1x1x128xf32> to vector<1x128xf32>
    %11 = vector.broadcast %10 : vector<1x128xf32> to vector<16x128xf32>
    %12 = arith.addf %8, %11 : vector<16x128xf32>
    %cst_11 = arith.constant 0.000000e+00 : f32
    %13 = vector.broadcast %cst_11 : f32 to vector<16x128xf32>
    %14 = arith.maximumf %12, %13 : vector<16x128xf32>
    %15 = arith.truncf %14 : vector<16x128xf32> to vector<16x128xbf16>
    %c1 = arith.constant 1 : index
    %c0_12 = arith.constant 0 : index
    %c0_13 = arith.constant 0 : index
    %16 = vector.load %arg3[%c1, %c0_12, %c0_13] : memref<3x128x128xbf16, #tpu.memory_space<vmem>>, vector<1x128x128xbf16>
    %17 = vector.shape_cast %16 : vector<1x128x128xbf16> to vector<128x128xbf16>
    %cst_14 = arith.constant dense<0.000000e+00> : vector<16x128xf32>
    %18 = tpu.matmul %15, %17, %cst_14 {dimension_numbers = #tpu.dot_dimension_numbers<[1], [0], [0], [1], [0, 0, 1, 1], [], []>} : vector<16x128xbf16>, vector<128x128xbf16>, vector<16x128xf32> -> vector<16x128xf32>
    %c1_15 = arith.constant 1 : index
    %c0_16 = arith.constant 0 : index
    %c0_17 = arith.constant 0 : index
    %19 = vector.load %arg4[%c1_15, %c0_16, %c0_17] : memref<3x1x128xf32, #tpu.memory_space<vmem>>, vector<1x1x128xf32>
    %20 = vector.shape_cast %19 : vector<1x1x128xf32> to vector<1x128xf32>
    %21 = vector.broadcast %20 : vector<1x128xf32> to vector<16x128xf32>
    %22 = arith.addf %18, %21 : vector<16x128xf32>
    %cst_18 = arith.constant 0.000000e+00 : f32
    %23 = vector.broadcast %cst_18 : f32 to vector<16x128xf32>
    %24 = arith.maximumf %22, %23 : vector<16x128xf32>
    %25 = arith.truncf %24 : vector<16x128xf32> to vector<16x128xbf16>
    %c2 = arith.constant 2 : index
    %c0_19 = arith.constant 0 : index
    %c0_20 = arith.constant 0 : index
    %26 = vector.load %arg3[%c2, %c0_19, %c0_20] : memref<3x128x128xbf16, #tpu.memory_space<vmem>>, vector<1x128x128xbf16>
    %27 = vector.shape_cast %26 : vector<1x128x128xbf16> to vector<128x128xbf16>
    %cst_21 = arith.constant dense<0.000000e+00> : vector<16x128xf32>
    %28 = tpu.matmul %25, %27, %cst_21 {dimension_numbers = #tpu.dot_dimension_numbers<[1], [0], [0], [1], [0, 0, 1, 1], [], []>} : vector<16x128xbf16>, vector<128x128xbf16>, vector<16x128xf32> -> vector<16x128xf32>
    %c2_22 = arith.constant 2 : index
    %c0_23 = arith.constant 0 : index
    %c0_24 = arith.constant 0 : index
    %29 = vector.load %arg4[%c2_22, %c0_23, %c0_24] : memref<3x1x128xf32, #tpu.memory_space<vmem>>, vector<1x1x128xf32>
    %30 = vector.shape_cast %29 : vector<1x1x128xf32> to vector<1x128xf32>
    %31 = vector.broadcast %30 : vector<1x128xf32> to vector<16x128xf32>
    %32 = arith.addf %28, %31 : vector<16x128xf32>
    %33 = arith.truncf %32 : vector<16x128xf32> to vector<16x128xbf16>
    %c0_25 = arith.constant 0 : index
    %c0_26 = arith.constant 0 : index
    %34 = vector.load %arg5[%c0_25, %c0_26] : memref<16x128xbf16, #tpu.memory_space<vmem>>, vector<16x128xbf16>
    tpu.vector_store %arg5[%c0_25, %c0_26], %33 {strides = array<i32>} : memref<16x128xbf16, #tpu.memory_space<vmem>>, vector<16x128xbf16>,
    return
  }
  func.func @transform_0(%arg0: i32) -> (i32, i32) {
    %c0_i32 = arith.constant 0 : i32
    %c0_i32_0 = arith.constant 0 : i32
    return %arg0, %c0_i32 : i32, i32
  }
  func.func @transform_1(%arg0: i32) -> (i32, i32) {
    %c0_i32 = arith.constant 0 : i32
    %c0_i32_0 = arith.constant 0 : i32
    %c0_i32_1 = arith.constant 0 : i32
    return %c0_i32, %c0_i32_0 : i32, i32
  }
  func.func @transform_2(%arg0: i32) -> (i32, i32, i32) {
    %c0_i32 = arith.constant 0 : i32
    %c0_i32_0 = arith.constant 0 : i32
    %c0_i32_1 = arith.constant 0 : i32
    %c0_i32_2 = arith.constant 0 : i32
    return %c0_i32, %c0_i32_0, %c0_i32_1 : i32, i32, i32
  }
  func.func @transform_3(%arg0: i32) -> (i32, i32, i32) {
    %c0_i32 = arith.constant 0 : i32
    %c0_i32_0 = arith.constant 0 : i32
    %c0_i32_1 = arith.constant 0 : i32
    %c0_i32_2 = arith.constant 0 : i32
    return %c0_i32, %c0_i32_0, %c0_i32_1 : i32, i32, i32
  }
  func.func @transform_4(%arg0: i32) -> (i32, i32) {
    %c0_i32 = arith.constant 0 : i32
    %c0_i32_0 = arith.constant 0 : i32
    return %arg0, %c0_i32 : i32, i32
  }
}

</mosaic_0001>

<llo_original>
// kernel: tpu_custom_call.1
$region0: #{tpu_custom_call.1}
  #allocation0 [shape = 'u32[]', space=smem, size = 0x4, offset = 0x4, fixed_abs, tag = 'smem constant byte address 0x4 - core index']
  #allocation1 [shape = 'u32[144,128]{1,0:T(1,128)}', space=vmem, size = 0x12000, scoped, tag = 'internal scratch']
  %s0 = inlined_call_operand.vmem [shape: bf16[16,8], index: 0, kind: input, shape index: {}]
  %s1 = inlined_call_operand.vmem [shape: bf16[8,128], index: 1, kind: input, shape index: {}]
  %s2 = inlined_call_operand.hbm [shape: bf16[3,128,128], index: 2, kind: input, shape index: {}]
  %s3 = inlined_call_operand.vmem [shape: f32[3,1,128], index: 3, kind: input, shape index: {}]
  %s4 = inlined_call_operand.hbm [shape: bf16[16,128], index: 4, kind: output, shape index: {}]
  %s5 = sld [smem:[#allocation0]]
  $region30: #{tpu_custom_call.1} parent=0
    _
  %s7 = ssub.s32 1, %s5
  %s8 = scalar_select 0, %s7, %s5
  $region1: #{tpu_custom_call.1} parent=0
    #allocation2 [shape = 'u8[98304]{0}', space=vmem, size = 0x18000, scoped, tag = 'input window, operand 2, single buffered']
    #allocation3 [shape = 's32[1]{0}', space=sflag, size = 0x4, scoped, tag = 'scoped memory for tpu_custom_call.1']
    #allocation4 [shape = 's32[1]{0}', space=sflag, size = 0x4, scoped, tag = 'scoped memory for tpu_custom_call.1']
    #allocation5 [shape = 'u8[4096]{0}', space=vmem, size = 0x1000, scoped, tag = 'output window, operand 0, single buffered']
    %9 = vsyncpa [#allocation3], 0
    %10 = vsyncpa [#allocation4], 0
    // Predicated region
    $region2: #{tpu_custom_call.1} parent=1 // pred_check
      _
    $region3: #{tpu_custom_call.1} parent=1 // pred_check_branch
      %12 = sbr.rel (0) target = $region5
    $region4: #{tpu_custom_call.1} parent=1 // pred_region
      _
    $region5: #{tpu_custom_call.1} parent=1 // pred_fallthru
      _
    // Predicated region
    $region6: #{tpu_custom_call.1} parent=1 // pred_check
      _
    $region7: #{tpu_custom_call.1} parent=1 // pred_check_branch
      %14 = sbr.rel (0) target = $region9
    $region8: #{tpu_custom_call.1} parent=1 // pred_region
      _
    $region9: #{tpu_custom_call.1} parent=1 // pred_fallthru
      _
    // Predicated region
    $region10: #{tpu_custom_call.1} parent=1 // pred_check
      _
    $region11: #{tpu_custom_call.1} parent=1 // pred_check_branch
      %16 = sbr.rel (0) target = $region13
    $region12: #{tpu_custom_call.1} parent=1 // pred_region
      %s18 = ssub.s32 3072, 3072
      %19 = vsyncadd [#allocation3], %s18
      %s20 = sshll.u32 [#allocation2], 4
      %s21 = int_to_ptr.vmem [resolvable:$true] %s20
      %26 = dma.hbm_to_vmem [thread:$0]  %s2, 3072, %s21, [#allocation3], 64, 64, 4
    $region13: #{tpu_custom_call.1} parent=1 // pred_fallthru
      _
    // Predicated region
    $region14: #{tpu_custom_call.1} parent=1 // pred_check
      _
    $region15: #{tpu_custom_call.1} parent=1 // pred_check_branch
      %28 = sbr.rel (0) target = $region17
    $region16: #{tpu_custom_call.1} parent=1 // pred_region
      _
    $region17: #{tpu_custom_call.1} parent=1 // pred_fallthru
      _
    // Predicated region
    $region18: #{tpu_custom_call.1} parent=1 // pred_check
      _
    $region19: #{tpu_custom_call.1} parent=1 // pred_check_branch
      %30 = sbr.rel (0) target = $region21
    $region20: #{tpu_custom_call.1} parent=1 // pred_region
      %31 = dma.done [#allocation3], 3072
    $region21: #{tpu_custom_call.1} parent=1 // pred_fallthru
      _
    %v33 = vld [vmem:[%s0] sm:$0xf]
    %v34 = vld [vmem:[%s0 + $0x4] sm:$0xf]
    %v35 = vld [vmem:[%s1] sm:$0xf]
    %v38 = vunpack.c.l.b16 %v33
    %v39 = vunpack.c.l.b16 %v34
    %v40 = vpack.c.b16 %v39, %v38
    %vm41 = vcmask 64512
    %v43 = vsel %vm41, %v40, 0
    %vm45 = vcmask 1043456
    %v47 = vsel %vm45, %v35, 0
    %49 = vmatprep.subr.bf16.mxu0 0
    %50 = vmatpush1.bf16.msra.mxu0 %v47
    %51 = vmatprep.subr.bf16.mxu0 0
    %52 = vmatpush1.bf16.msra.mxu0 0
    %53 = vmatprep.subr.bf16.mxu0 0
    %54 = vmatpush1.bf16.msra.mxu0 0
    %55 = vmatprep.subr.bf16.mxu0 0
    %56 = vmatpush1.bf16.msra.mxu0 0
    %57 = vmatprep.subr.bf16.mxu0 0
    %58 = vmatpush1.bf16.msra.mxu0 0
    %59 = vmatprep.subr.bf16.mxu0 0
    %60 = vmatpush1.bf16.msra.mxu0 0
    %61 = vmatprep.subr.bf16.mxu0 0
    %62 = vmatpush1.bf16.msra.mxu0 0
    %63 = vmatprep.subr.bf16.mxu0 0
    %64 = vmatpush1.bf16.msra.mxu0 0
    %65 = vmatprep.subr.bf16.mxu0 0
    %66 = vmatpush1.bf16.msra.mxu0 0
    %67 = vmatprep.subr.bf16.mxu0 0
    %68 = vmatpush1.bf16.msra.mxu0 0
    %69 = vmatprep.subr.bf16.mxu0 0
    %70 = vmatpush1.bf16.msra.mxu0 0
    %71 = vmatprep.subr.bf16.mxu0 0
    %72 = vmatpush1.bf16.msra.mxu0 0
    %73 = vmatprep.subr.bf16.mxu0 0
    %74 = vmatpush1.bf16.msra.mxu0 0
    %75 = vmatprep.subr.bf16.mxu0 0
    %76 = vmatpush1.bf16.msra.mxu0 0
    %77 = vmatprep.subr.bf16.mxu0 0
    %78 = vmatpush1.bf16.msra.mxu0 0
    %79 = vmatprep.subr.bf16.mxu0 0
    %80 = vmatpush1.bf16.msra.mxu0 0
    %81 = vmatprep.mubr.bf16.mxu0 0
    %82 = vmatmul.mubr.bf16.gmra.mrb[0].mxu0 %v43
    %v83 = vpop.f32.mrb[0].mxu0
    %v84 = vadd.f32 0.0, %v83
    %v85 = vpop.f32.mrb[0].mxu0
    %v86 = vpop.f32.mrb[0].mxu0
    %v87 = vadd.f32 0.0, %v86
    %v88 = vpop.f32.mrb[0].mxu0
    %89 = vdwg.mxu0
    %v90 = vmax.f32 %v84, 0.0
    %v91 = vmax.f32 %v87, 0.0
    %v92 = vpack.c.bf16 %v91, %v90
    %v93 = vld [vmem:[#allocation2] sm:$0xf]
    %v94 = vld [vmem:[#allocation2 + $0x4] sm:$0xf]
    %v95 = vld [vmem:[#allocation2 + $0x8] sm:$0xf]
    %v96 = vld [vmem:[#allocation2 + $0xc] sm:$0xf]
    %v97 = vld [vmem:[#allocation2 + $0x10] sm:$0xf]
    %v98 = vld [vmem:[#allocation2 + $0x14] sm:$0xf]
    %v99 = vld [vmem:[#allocation2 + $0x18] sm:$0xf]
    %v100 = vld [vmem:[#allocation2 + $0x1c] sm:$0xf]
    %v101 = vld [vmem:[#allocation2 + $0x20] sm:$0xf]
    %v102 = vld [vmem:[#allocation2 + $0x24] sm:$0xf]
    %v103 = vld [vmem:[#allocation2 + $0x28] sm:$0xf]
    %v104 = vld [vmem:[#allocation2 + $0x2c] sm:$0xf]
    %v105 = vld [vmem:[#allocation2 + $0x30] sm:$0xf]
    %v106 = vld [vmem:[#allocation2 + $0x34] sm:$0xf]
    %v107 = vld [vmem:[#allocation2 + $0x38] sm:$0xf]
    %v108 = vld [vmem:[#allocation2 + $0x3c] sm:$0xf]
    %v109 = vld [vmem:[%s3] sm:$0x1]
    %v111 = vlaneseq
    %v112 = vshrl.u32 %v111, 7
    %v113 = vsub.s32 0, %v112
    %v114 = vrot.slane %v109, %v113
    %v132 = vunpack.c.l.b16 %v93
    %v133 = vunpack.c.l.b16 %v94
    %v134 = vunpack.c.l.b16 %v95
    %v135 = vunpack.c.l.b16 %v96
    %v136 = vunpack.c.l.b16 %v97
    %v137 = vunpack.c.l.b16 %v98
    %v138 = vunpack.c.l.b16 %v99
    %v139 = vunpack.c.l.b16 %v100
    %v140 = vunpack.c.l.b16 %v101
    %v141 = vunpack.c.l.b16 %v102
    %v142 = vunpack.c.l.b16 %v103
    %v143 = vunpack.c.l.b16 %v104
    %v144 = vunpack.c.l.b16 %v105
    %v145 = vunpack.c.l.b16 %v106
    %v146 = vunpack.c.l.b16 %v107
    %v147 = vunpack.c.l.b16 %v108
    %v148 = vpack.c.b16 %v133, %v132
    %v149 = vpack.c.b16 %v135, %v134
    %v150 = vpack.c.b16 %v137, %v136
    %v151 = vpack.c.b16 %v139, %v138
    %v152 = vpack.c.b16 %v141, %v140
    %v153 = vpack.c.b16 %v143, %v142
    %v154 = vpack.c.b16 %v145, %v144
    %v155 = vpack.c.b16 %v147, %v146
    %164 = vmatprep.subr.bf16.mxu0 0
    %165 = vmatpush1.bf16.msra.mxu0 %v148
    %166 = vmatprep.subr.bf16.mxu0 0
    %167 = vmatpush1.bf16.msra.mxu0 %v149
    %168 = vmatprep.subr.bf16.mxu0 0
    %169 = vmatpush1.bf16.msra.mxu0 %v150
    %170 = vmatprep.subr.bf16.mxu0 0
    %171 = vmatpush1.bf16.msra.mxu0 %v151
    %172 = vmatprep.subr.bf16.mxu0 0
    %173 = vmatpush1.bf16.msra.mxu0 %v152
    %174 = vmatprep.subr.bf16.mxu0 0
    %175 = vmatpush1.bf16.msra.mxu0 %v153
    %176 = vmatprep.subr.bf16.mxu0 0
    %177 = vmatpush1.bf16.msra.mxu0 %v154
    %178 = vmatprep.subr.bf16.mxu0 0
    %179 = vmatpush1.bf16.msra.mxu0 %v155
    %180 = vmatprep.subr.bf16.mxu0 0
    %181 = vmatpush1.bf16.msra.mxu0 0
    %182 = vmatprep.subr.bf16.mxu0 0
    %183 = vmatpush1.bf16.msra.mxu0 0
    %184 = vmatprep.subr.bf16.mxu0 0
    %185 = vmatpush1.bf16.msra.mxu0 0
    %186 = vmatprep.subr.bf16.mxu0 0
    %187 = vmatpush1.bf16.msra.mxu0 0
    %188 = vmatprep.subr.bf16.mxu0 0
    %189 = vmatpush1.bf16.msra.mxu0 0
    %190 = vmatprep.subr.bf16.mxu0 0
    %191 = vmatpush1.bf16.msra.mxu0 0
    %192 = vmatprep.subr.bf16.mxu0 0
    %193 = vmatpush1.bf16.msra.mxu0 0
    %194 = vmatprep.subr.bf16.mxu0 0
    %195 = vmatpush1.bf16.msra.mxu0 0
    %196 = vmatprep.mubr.bf16.mxu0 0
    %197 = vmatmul.mubr.bf16.gmra.mrb[0].mxu0 %v92
    %v198 = vpop.f32.mrb[0].mxu0
    %v199 = vadd.f32 %v114, %v198
    %v200 = vpop.f32.mrb[0].mxu0
    %v201 = vpop.f32.mrb[0].mxu0
    %v202 = vadd.f32 %v114, %v201
    %v203 = vpop.f32.mrb[0].mxu0
    %204 = vdwg.mxu0
    %v205 = vmax.f32 %v199, 0.0
    %v206 = vmax.f32 %v202, 0.0
    %v207 = vpack.c.bf16 %v206, %v205
    %s208 = scalar_lea.vmem [#allocation2], 64
    %v209 = vld [vmem:[%s208] sm:$0xf]
    %v210 = vld [vmem:[%s208 + $0x4] sm:$0xf]
    %v211 = vld [vmem:[%s208 + $0x8] sm:$0xf]
    %v212 = vld [vmem:[%s208 + $0xc] sm:$0xf]
    %v213 = vld [vmem:[%s208 + $0x10] sm:$0xf]
    %v214 = vld [vmem:[%s208 + $0x14] sm:$0xf]
    %v215 = vld [vmem:[%s208 + $0x18] sm:$0xf]
    %v216 = vld [vmem:[%s208 + $0x1c] sm:$0xf]
    %v217 = vld [vmem:[%s208 + $0x20] sm:$0xf]
    %v218 = vld [vmem:[%s208 + $0x24] sm:$0xf]
    %v219 = vld [vmem:[%s208 + $0x28] sm:$0xf]
    %v220 = vld [vmem:[%s208 + $0x2c] sm:$0xf]
    %v221 = vld [vmem:[%s208 + $0x30] sm:$0xf]
    %v222 = vld [vmem:[%s208 + $0x34] sm:$0xf]
    %v223 = vld [vmem:[%s208 + $0x38] sm:$0xf]
    %v224 = vld [vmem:[%s208 + $0x3c] sm:$0xf]
    %s225 = scalar_lea.vmem %s3, 1
    %v226 = vld [vmem:[%s225] sm:$0x1]
    %v228 = vlaneseq
    %v229 = vshrl.u32 %v228, 7
    %v230 = vsub.s32 0, %v229
    %v231 = vrot.slane %v226, %v230
    %v249 = vunpack.c.l.b16 %v209
    %v250 = vunpack.c.l.b16 %v210
    %v251 = vunpack.c.l.b16 %v211
    %v252 = vunpack.c.l.b16 %v212
    %v253 = vunpack.c.l.b16 %v213
    %v254 = vunpack.c.l.b16 %v214
    %v255 = vunpack.c.l.b16 %v215
    %v256 = vunpack.c.l.b16 %v216
    %v257 = vunpack.c.l.b16 %v217
    %v258 = vunpack.c.l.b16 %v218
    %v259 = vunpack.c.l.b16 %v219
    %v260 = vunpack.c.l.b16 %v220
    %v261 = vunpack.c.l.b16 %v221
    %v262 = vunpack.c.l.b16 %v222
    %v263 = vunpack.c.l.b16 %v223
    %v264 = vunpack.c.l.b16 %v224
    %v265 = vpack.c.b16 %v250, %v249
    %v266 = vpack.c.b16 %v252, %v251
    %v267 = vpack.c.b16 %v254, %v253
    %v268 = vpack.c.b16 %v256, %v255
    %v269 = vpack.c.b16 %v258, %v257
    %v270 = vpack.c.b16 %v260, %v259
    %v271 = vpack.c.b16 %v262, %v261
    %v272 = vpack.c.b16 %v264, %v263
    %281 = vmatprep.subr.bf16.mxu0 0
    %282 = vmatpush1.bf16.msra.mxu0 %v265
    %283 = vmatprep.subr.bf16.mxu0 0
    %284 = vmatpush1.bf16.msra.mxu0 %v266
    %285 = vmatprep.subr.bf16.mxu0 0
    %286 = vmatpush1.bf16.msra.mxu0 %v267
    %287 = vmatprep.subr.bf16.mxu0 0
    %288 = vmatpush1.bf16.msra.mxu0 %v268
    %289 = vmatprep.subr.bf16.mxu0 0
    %290 = vmatpush1.bf16.msra.mxu0 %v269
    %291 = vmatprep.subr.bf16.mxu0 0
    %292 = vmatpush1.bf16.msra.mxu0 %v270
    %293 = vmatprep.subr.bf16.mxu0 0
    %294 = vmatpush1.bf16.msra.mxu0 %v271
    %295 = vmatprep.subr.bf16.mxu0 0
    %296 = vmatpush1.bf16.msra.mxu0 %v272
    %297 = vmatprep.subr.bf16.mxu0 0
    %298 = vmatpush1.bf16.msra.mxu0 0
    %299 = vmatprep.subr.bf16.mxu0 0
    %300 = vmatpush1.bf16.msra.mxu0 0
    %301 = vmatprep.subr.bf16.mxu0 0
    %302 = vmatpush1.bf16.msra.mxu0 0
    %303 = vmatprep.subr.bf16.mxu0 0
    %304 = vmatpush1.bf16.msra.mxu0 0
    %305 = vmatprep.subr.bf16.mxu0 0
    %306 = vmatpush1.bf16.msra.mxu0 0
    %307 = vmatprep.subr.bf16.mxu0 0
    %308 = vmatpush1.bf16.msra.mxu0 0
    %309 = vmatprep.subr.bf16.mxu0 0
    %310 = vmatpush1.bf16.msra.mxu0 0
    %311 = vmatprep.subr.bf16.mxu0 0
    %312 = vmatpush1.bf16.msra.mxu0 0
    %313 = vmatprep.mubr.bf16.mxu0 0
    %314 = vmatmul.mubr.bf16.gmra.mrb[0].mxu0 %v207
    %v315 = vpop.f32.mrb[0].mxu0
    %v316 = vadd.f32 %v231, %v315
    %v317 = vpop.f32.mrb[0].mxu0
    %v318 = vpop.f32.mrb[0].mxu0
    %v319 = vadd.f32 %v231, %v318
    %v320 = vpop.f32.mrb[0].mxu0
    %321 = vdwg.mxu0
    %v322 = vmax.f32 %v316, 0.0
    %v323 = vmax.f32 %v319, 0.0
    %v324 = vpack.c.bf16 %v323, %v322
    %s325 = scalar_lea.vmem [#allocation2], 128
    %v326 = vld [vmem:[%s325] sm:$0xf]
    %v327 = vld [vmem:[%s325 + $0x4] sm:$0xf]
    %v328 = vld [vmem:[%s325 + $0x8] sm:$0xf]
    %v329 = vld [vmem:[%s325 + $0xc] sm:$0xf]
    %v330 = vld [vmem:[%s325 + $0x10] sm:$0xf]
    %v331 = vld [vmem:[%s325 + $0x14] sm:$0xf]
    %v332 = vld [vmem:[%s325 + $0x18] sm:$0xf]
    %v333 = vld [vmem:[%s325 + $0x1c] sm:$0xf]
    %v334 = vld [vmem:[%s325 + $0x20] sm:$0xf]
    %v335 = vld [vmem:[%s325 + $0x24] sm:$0xf]
    %v336 = vld [vmem:[%s325 + $0x28] sm:$0xf]
    %v337 = vld [vmem:[%s325 + $0x2c] sm:$0xf]
    %v338 = vld [vmem:[%s325 + $0x30] sm:$0xf]
    %v339 = vld [vmem:[%s325 + $0x34] sm:$0xf]
    %v340 = vld [vmem:[%s325 + $0x38] sm:$0xf]
    %v341 = vld [vmem:[%s325 + $0x3c] sm:$0xf]
    %s342 = scalar_lea.vmem %s3, 2
    %v343 = vld [vmem:[%s342] sm:$0x1]
    %v345 = vlaneseq
    %v346 = vshrl.u32 %v345, 7
    %v347 = vsub.s32 0, %v346
    %v348 = vrot.slane %v343, %v347
    %v366 = vunpack.c.l.b16 %v326
    %v367 = vunpack.c.l.b16 %v327
    %v368 = vunpack.c.l.b16 %v328
    %v369 = vunpack.c.l.b16 %v329
    %v370 = vunpack.c.l.b16 %v330
    %v371 = vunpack.c.l.b16 %v331
    %v372 = vunpack.c.l.b16 %v332
    %v373 = vunpack.c.l.b16 %v333
    %v374 = vunpack.c.l.b16 %v334
    %v375 = vunpack.c.l.b16 %v335
    %v376 = vunpack.c.l.b16 %v336
    %v377 = vunpack.c.l.b16 %v337
    %v378 = vunpack.c.l.b16 %v338
    %v379 = vunpack.c.l.b16 %v339
    %v380 = vunpack.c.l.b16 %v340
    %v381 = vunpack.c.l.b16 %v341
    %v382 = vpack.c.b16 %v367, %v366
    %v383 = vpack.c.b16 %v369, %v368
    %v384 = vpack.c.b16 %v371, %v370
    %v385 = vpack.c.b16 %v373, %v372
    %v386 = vpack.c.b16 %v375, %v374
    %v387 = vpack.c.b16 %v377, %v376
    %v388 = vpack.c.b16 %v379, %v378
    %v389 = vpack.c.b16 %v381, %v380
    %398 = vmatprep.subr.bf16.mxu0 0
    %399 = vmatpush1.bf16.msra.mxu0 %v382
    %400 = vmatprep.subr.bf16.mxu0 0
    %401 = vmatpush1.bf16.msra.mxu0 %v383
    %402 = vmatprep.subr.bf16.mxu0 0
    %403 = vmatpush1.bf16.msra.mxu0 %v384
    %404 = vmatprep.subr.bf16.mxu0 0
    %405 = vmatpush1.bf16.msra.mxu0 %v385
    %406 = vmatprep.subr.bf16.mxu0 0
    %407 = vmatpush1.bf16.msra.mxu0 %v386
    %408 = vmatprep.subr.bf16.mxu0 0
    %409 = vmatpush1.bf16.msra.mxu0 %v387
    %410 = vmatprep.subr.bf16.mxu0 0
    %411 = vmatpush1.bf16.msra.mxu0 %v388
    %412 = vmatprep.subr.bf16.mxu0 0
    %413 = vmatpush1.bf16.msra.mxu0 %v389
    %414 = vmatprep.subr.bf16.mxu0 0
    %415 = vmatpush1.bf16.msra.mxu0 0
    %416 = vmatprep.subr.bf16.mxu0 0
    %417 = vmatpush1.bf16.msra.mxu0 0
    %418 = vmatprep.subr.bf16.mxu0 0
    %419 = vmatpush1.bf16.msra.mxu0 0
    %420 = vmatprep.subr.bf16.mxu0 0
    %421 = vmatpush1.bf16.msra.mxu0 0
    %422 = vmatprep.subr.bf16.mxu0 0
    %423 = vmatpush1.bf16.msra.mxu0 0
    %424 = vmatprep.subr.bf16.mxu0 0
    %425 = vmatpush1.bf16.msra.mxu0 0
    %426 = vmatprep.subr.bf16.mxu0 0
    %427 = vmatpush1.bf16.msra.mxu0 0
    %428 = vmatprep.subr.bf16.mxu0 0
    %429 = vmatpush1.bf16.msra.mxu0 0
    %430 = vmatprep.mubr.bf16.mxu0 0
    %431 = vmatmul.mubr.bf16.gmra.mrb[0].mxu0 %v324
    %v432 = vpop.f32.mrb[0].mxu0
    %v433 = vadd.f32 %v348, %v432
    %v434 = vpop.f32.mrb[0].mxu0
    %v435 = vpop.f32.mrb[0].mxu0
    %v436 = vadd.f32 %v348, %v435
    %v437 = vpop.f32.mrb[0].mxu0
    %438 = vdwg.mxu0
    %v439 = vpack.c.bf16 %v436, %v433
    %v441 = vunpack.c.l.b16 %v439
    %v442 = vunpack.c.h.b16 %v439
    %v443 = vpack.c.b16 %v441, %v441
    %v444 = vpack.c.b16 %v442, %v442
    %447 = vst [vmem:[#allocation5] sm:$0xf] %v443
    %448 = vst [vmem:[#allocation5 + $0x4] sm:$0xf] %v444
    // Predicated region
    $region22: #{tpu_custom_call.1} parent=1 // pred_check
      _
    $region23: #{tpu_custom_call.1} parent=1 // pred_check_branch
      %450 = sbr.rel (0) target = $region25
    $region24: #{tpu_custom_call.1} parent=1 // pred_region
      %s452 = ssub.s32 128, 128
      %453 = vsyncadd [#allocation4], %s452
      %s454 = sshll.u32 [#allocation5], 4
      %s455 = int_to_ptr.vmem [resolvable:$true] %s454
      %460 = dma.vmem_to_hbm [thread:$0]  %s455, 128, %s4, [#allocation4], 64, 64, 4
    $region25: #{tpu_custom_call.1} parent=1 // pred_fallthru
      _
    // Predicated region
    $region26: #{tpu_custom_call.1} parent=1 // pred_check
      _
    $region27: #{tpu_custom_call.1} parent=1 // pred_check_branch
      %462 = sbr.rel (0) target = $region29
    $region28: #{tpu_custom_call.1} parent=1 // pred_region
      %463 = dma.done [#allocation4], 128
    $region29: #{tpu_custom_call.1} parent=1 // pred_fallthru
      _
    %464 = vsyncpa [#allocation3], 1
    %465 = vsyncpa [#allocation4], 1

</llo_original>
